<compile_context>
chip_gen: v7x
topology: tpu7x:2x2x1
jax: 0.10.0
libtpu: 0.0.40
codegen_flags: <defaults>
</compile_context>

<pallas_src>
import math

import jax
import jax.numpy as jnp
from jax.experimental import pallas as pl
from jax.experimental.pallas import tpu as pltpu

PAD = 0  # mask symbol / padding index, as in the reference module


def _round_up(x, m):
    return ((x + m - 1) // m) * m


def _positional_embedding(length, channels, min_timescale=1.0, max_timescale=1.0e4):
    """Sinusoidal positional embedding, matching seq2seq positional_embedding()."""
    assert channels % 2 == 0
    num_timescales = channels // 2
    log_timescale_increment = math.log(float(max_timescale) / float(min_timescale)) / (
        float(num_timescales) - 1
    )
    position = jnp.arange(length, dtype=jnp.float32)
    inv_timescales = min_timescale * jnp.exp(
        jnp.arange(num_timescales, dtype=jnp.float32) * -log_timescale_increment
    )
    scaled_time = position[:, None] * inv_timescales[None, :]  # (T, E//2)
    return jnp.concatenate([jnp.sin(scaled_time), jnp.cos(scaled_time)], axis=1)  # (T, E)


def _encoder_kernel(ctok_ref, cpos_ref, table_ref, out_ref):
    """One grid step: build a {0,1} selection matrix, matmul the resident table.

    ctok_ref : VMEM (rows, F) int32 -- column id of scale*emb[token] per folded token
    cpos_ref : VMEM (rows, F) int32 -- column id of pos[position]   per folded token
    table_ref: VMEM (2K, 128) bf16  -- resident block-diagonal table, hi rows then lo rows
    out_ref  : VMEM (rows, 128) f32 -- folded, lane-dense output slab
    """
    rows = out_ref.shape[0]
    k2 = table_ref.shape[0]
    k = k2 // 2                       # first K rows = bf16 hi part, last K rows = bf16 lo part
    ct = ctok_ref[...]
    cp = cpos_ref[...]
    col = jax.lax.broadcasted_iota(jnp.int32, (rows, k2), 1)

    hot = None
    for f in range(ct.shape[1]):      # static unroll over the F tokens folded per output row
        ctf = ct[:, f:f + 1]
        cpf = cp[:, f:f + 1]
        h = (col == ctf) | (col == cpf) | (col == ctf + k) | (col == cpf + k)
        hot = h if hot is None else (hot | h)

    # {0,1} selection in bf16: exact on the MXU's native bf16 path.
    sel = jnp.where(hot, 1.0, 0.0).astype(jnp.bfloat16)
    out_ref[...] = jnp.dot(sel, table_ref[...], preferred_element_type=jnp.float32)


def prevasive_encoder_forward(tokens, emb_table, hidden_size, *, max_rows_per_step=256):
    """PrevasiveEncoder.forward: returns (outputs (B,T,E) f32, mask (B,T) bool)."""
    B, T = tokens.shape
    V, E = emb_table.shape
    N = B * T

    assert E % 2 == 0, "sinusoidal positional embedding needs an even channel count"
    # TODO(synk): E that is a multiple of 128 needs no folding (already lane-dense);
    # other widths would need lane padding.  This module's configs keep 128 % E == 0.
    assert 128 % E == 0, "lane-dense folding requires E to divide 128"
    F = 128 // E                                   # tokens folded per 128-lane output row
    S = V + T                                      # combined-table rows per fold slot (emb + pos)

    scale = float(hidden_size) ** 0.5
    pos_tab = _positional_embedding(T, E)                                           # (T, E)
    combined = jnp.concatenate([emb_table.astype(jnp.float32) * scale, pos_tab], 0)  # (S, E)

    # Block-diagonal expansion: fold slot f owns lanes [f*E, (f+1)*E).
    wide = jnp.einsum("fg,se->fsge", jnp.eye(F, dtype=jnp.float32), combined)
    wide = wide.reshape(F * S, F * E)                                               # (F*S, 128)
    K = _round_up(F * S, 8)
    wide = jnp.pad(wide, ((0, K - F * S), (0, 0)))
    # bf16 hi/lo split keeps f32 accuracy through the native bf16 MXU path and
    # halves the resident table footprint.
    hi = wide.astype(jnp.bfloat16)
    lo = (wide - hi.astype(jnp.float32)).astype(jnp.bfloat16)
    table_split = jnp.concatenate([hi, lo], axis=0)                                 # (2K, 128) bf16

    # Tile the flattened B*T token axis, F tokens folded per output row.
    rows_needed = pl.cdiv(N, F)
    rows_per_step = min(max_rows_per_step, _round_up(rows_needed, 8))
    rows_pad = _round_up(rows_needed, rows_per_step)
    n_pad = rows_pad * F

    tok_flat = tokens.reshape(N).astype(jnp.int32)
    tok_flat = jnp.pad(tok_flat, (0, n_pad - N), constant_values=PAD)  # padded rows sliced off below

    n_idx = jnp.arange(n_pad, dtype=jnp.int32)
    slot = n_idx % F                               # fold slot of flat token n
    ctok = slot * S + tok_flat                     # column of scale*emb[token]
    cpos = slot * S + V + (n_idx % T)              # column of pos[n mod T]
    ctok2d = ctok.reshape(rows_pad, F)
    cpos2d = cpos.reshape(rows_pad, F)

    grid = (rows_pad // rows_per_step,)
    out_folded = pl.pallas_call(
        _encoder_kernel,
        out_shape=jax.ShapeDtypeStruct((rows_pad, 128), jnp.float32),
        grid=grid,
        in_specs=[
            pl.BlockSpec((rows_per_step, F), lambda g: (g, 0)),        # token column ids
            pl.BlockSpec((rows_per_step, F), lambda g: (g, 0)),        # position column ids
            pl.BlockSpec((2 * K, 128), lambda g: (0, 0)),              # resident table (same block)
        ],
        out_specs=pl.BlockSpec((rows_per_step, 128), lambda g: (g, 0)),
        compiler_params=pltpu.CompilerParams(
            dimension_semantics=("parallel",),
        ),
    )(ctok2d, cpos2d, table_split)

    out = out_folded.reshape(n_pad, E)[:N].reshape(B, T, E)
    # Padding mask is a trivial compare; keep it in XLA rather than adding a
    # second, non-lane-dense kernel output.
    mask = tokens == PAD
    # TODO(synk): training-mode dropout would use pltpu.prng_seed +
    # pltpu.stateful_bernoulli inside the kernel; eval / p=0 is an identity.
    return out, mask


def _reference(tokens, emb_table, hidden_size):
    """Pure-JAX reference of the PyTorch forward (dropout is identity)."""
    B, T = tokens.shape
    x = emb_table[tokens].astype(jnp.float32) * (float(hidden_size) ** 0.5)
    x = x + _positional_embedding(T, emb_table.shape[1])[None]
    mask = tokens == PAD
    return x, mask


if __name__ == "__main__":
    # Small shapes consistent with the module: vocab=16, seq=8, batch=2, hidden=32.
    vocab_size = 16
    hidden_size = 32          # embedding_size defaults to hidden_size
    B, T = 2, 8

    key = jax.random.PRNGKey(0)
    k_emb, k_tok = jax.random.split(key)

    # Deterministic parameter init (nn.Embedding ~ N(0,1)); zero the PAD row
    # to mimic padding_idx=PAD.
    emb_table = jax.random.normal(k_emb, (vocab_size, hidden_size), dtype=jnp.float32)
    emb_table = emb_table.at[PAD].set(0.0)

    tokens = jax.random.randint(k_tok, (B, T), 0, vocab_size, dtype=jnp.int32)
    # Force a couple of PAD tokens so the mask path is exercised.
    tokens = tokens.at[0, -1].set(PAD).at[1, -2].set(PAD)

    out, mask = prevasive_encoder_forward(tokens, emb_table, hidden_size)
    out = jax.block_until_ready(out)
    mask = jax.block_until_ready(mask)

    ref_out, ref_mask = _reference(tokens, emb_table, hidden_size)
    assert out.shape == (B, T, hidden_size)
    assert mask.shape == (B, T)
    assert jnp.allclose(out, ref_out, atol=1e-4, rtol=1e-4), float(
        jnp.max(jnp.abs(out - ref_out))
    )
    assert jnp.array_equal(mask, ref_mask)

    print("KERNEL_OK")
</pallas_src>

<mosaic_0001>
module attributes {stable_mosaic.version = 11 : i64} {
  func.func @_encoder_kernel(%arg0: i32, %arg1: memref<8x4xi32, #tpu.memory_space<vmem>>, %arg2: memref<8x4xi32, #tpu.memory_space<vmem>>, %arg3: memref<192x128xbf16, #tpu.memory_space<vmem>>, %arg4: memref<8x128xf32, #tpu.memory_space<vmem>>) attributes {dimension_semantics = [#tpu.dimension_semantics<parallel>], iteration_bounds = array<i64: 1>, scalar_prefetch = 0 : i64, scratch_operands = 0 : i64, tpu.core_type = #tpu.core_type<tc>, window_params = [{transform_indices = @transform_0, window_bounds = array<i64: 8, 4>}, {transform_indices = @transform_1, window_bounds = array<i64: 8, 4>}, {pipeline_mode = #tpu.pipeline_mode<synchronous>, transform_indices = @transform_2, window_bounds = array<i64: 192, 128>}, {transform_indices = @transform_3, window_bounds = array<i64: 8, 128>}]} {
    %c0 = arith.constant 0 : index
    %c0_0 = arith.constant 0 : index
    %0 = vector.load %arg1[%c0, %c0_0] : memref<8x4xi32, #tpu.memory_space<vmem>>, vector<8x4xi32>
    %c0_1 = arith.constant 0 : index
    %c0_2 = arith.constant 0 : index
    %1 = vector.load %arg2[%c0_1, %c0_2] : memref<8x4xi32, #tpu.memory_space<vmem>>, vector<8x4xi32>
    %2 = tpu.iota {dimensions = array<i32: 1>} : vector<8x192xi32>
    %3 = vector.extract_strided_slice %0 {offsets = [0, 0], sizes = [8, 1], strides = [1, 1]} : vector<8x4xi32> to vector<8x1xi32>
    %4 = vector.extract_strided_slice %1 {offsets = [0, 0], sizes = [8, 1], strides = [1, 1]} : vector<8x4xi32> to vector<8x1xi32>
    %5 = vector.broadcast %3 : vector<8x1xi32> to vector<8x192xi32>
    %6 = arith.cmpi eq, %2, %5 : vector<8x192xi32>
    %7 = vector.broadcast %4 : vector<8x1xi32> to vector<8x192xi32>
    %8 = arith.cmpi eq, %2, %7 : vector<8x192xi32>
    %9 = arith.ori %6, %8 : vector<8x192xi1>
    %c96_i32 = arith.constant 96 : i32
    %10 = vector.broadcast %c96_i32 : i32 to vector<8x1xi32>
    %11 = arith.addi %3, %10 : vector<8x1xi32>
    %12 = vector.broadcast %11 : vector<8x1xi32> to vector<8x192xi32>
    %13 = arith.cmpi eq, %2, %12 : vector<8x192xi32>
    %14 = arith.ori %9, %13 : vector<8x192xi1>
    %c96_i32_3 = arith.constant 96 : i32
    %15 = vector.broadcast %c96_i32_3 : i32 to vector<8x1xi32>
    %16 = arith.addi %4, %15 : vector<8x1xi32>
    %17 = vector.broadcast %16 : vector<8x1xi32> to vector<8x192xi32>
    %18 = arith.cmpi eq, %2, %17 : vector<8x192xi32>
    %19 = arith.ori %14, %18 : vector<8x192xi1>
    %20 = vector.extract_strided_slice %0 {offsets = [0, 1], sizes = [8, 1], strides = [1, 1]} : vector<8x4xi32> to vector<8x1xi32>
    %21 = vector.extract_strided_slice %1 {offsets = [0, 1], sizes = [8, 1], strides = [1, 1]} : vector<8x4xi32> to vector<8x1xi32>
    %22 = vector.broadcast %20 : vector<8x1xi32> to vector<8x192xi32>
    %23 = arith.cmpi eq, %2, %22 : vector<8x192xi32>
    %24 = vector.broadcast %21 : vector<8x1xi32> to vector<8x192xi32>
    %25 = arith.cmpi eq, %2, %24 : vector<8x192xi32>
    %26 = arith.ori %23, %25 : vector<8x192xi1>
    %c96_i32_4 = arith.constant 96 : i32
    %27 = vector.broadcast %c96_i32_4 : i32 to vector<8x1xi32>
    %28 = arith.addi %20, %27 : vector<8x1xi32>
    %29 = vector.broadcast %28 : vector<8x1xi32> to vector<8x192xi32>
    %30 = arith.cmpi eq, %2, %29 : vector<8x192xi32>
    %31 = arith.ori %26, %30 : vector<8x192xi1>
    %c96_i32_5 = arith.constant 96 : i32
    %32 = vector.broadcast %c96_i32_5 : i32 to vector<8x1xi32>
    %33 = arith.addi %21, %32 : vector<8x1xi32>
    %34 = vector.broadcast %33 : vector<8x1xi32> to vector<8x192xi32>
    %35 = arith.cmpi eq, %2, %34 : vector<8x192xi32>
    %36 = arith.ori %31, %35 : vector<8x192xi1>
    %37 = arith.ori %19, %36 : vector<8x192xi1>
    %38 = vector.extract_strided_slice %0 {offsets = [0, 2], sizes = [8, 1], strides = [1, 1]} : vector<8x4xi32> to vector<8x1xi32>
    %39 = vector.extract_strided_slice %1 {offsets = [0, 2], sizes = [8, 1], strides = [1, 1]} : vector<8x4xi32> to vector<8x1xi32>
    %40 = vector.broadcast %38 : vector<8x1xi32> to vector<8x192xi32>
    %41 = arith.cmpi eq, %2, %40 : vector<8x192xi32>
    %42 = vector.broadcast %39 : vector<8x1xi32> to vector<8x192xi32>
    %43 = arith.cmpi eq, %2, %42 : vector<8x192xi32>
    %44 = arith.ori %41, %43 : vector<8x192xi1>
    %c96_i32_6 = arith.constant 96 : i32
    %45 = vector.broadcast %c96_i32_6 : i32 to vector<8x1xi32>
    %46 = arith.addi %38, %45 : vector<8x1xi32>
    %47 = vector.broadcast %46 : vector<8x1xi32> to vector<8x192xi32>
    %48 = arith.cmpi eq, %2, %47 : vector<8x192xi32>
    %49 = arith.ori %44, %48 : vector<8x192xi1>
    %c96_i32_7 = arith.constant 96 : i32
    %50 = vector.broadcast %c96_i32_7 : i32 to vector<8x1xi32>
    %51 = arith.addi %39, %50 : vector<8x1xi32>
    %52 = vector.broadcast %51 : vector<8x1xi32> to vector<8x192xi32>
    %53 = arith.cmpi eq, %2, %52 : vector<8x192xi32>
    %54 = arith.ori %49, %53 : vector<8x192xi1>
    %55 = arith.ori %37, %54 : vector<8x192xi1>
    %56 = vector.extract_strided_slice %0 {offsets = [0, 3], sizes = [8, 1], strides = [1, 1]} : vector<8x4xi32> to vector<8x1xi32>
    %57 = vector.extract_strided_slice %1 {offsets = [0, 3], sizes = [8, 1], strides = [1, 1]} : vector<8x4xi32> to vector<8x1xi32>
    %58 = vector.broadcast %56 : vector<8x1xi32> to vector<8x192xi32>
    %59 = arith.cmpi eq, %2, %58 : vector<8x192xi32>
    %60 = vector.broadcast %57 : vector<8x1xi32> to vector<8x192xi32>
    %61 = arith.cmpi eq, %2, %60 : vector<8x192xi32>
    %62 = arith.ori %59, %61 : vector<8x192xi1>
    %c96_i32_8 = arith.constant 96 : i32
    %63 = vector.broadcast %c96_i32_8 : i32 to vector<8x1xi32>
    %64 = arith.addi %56, %63 : vector<8x1xi32>
    %65 = vector.broadcast %64 : vector<8x1xi32> to vector<8x192xi32>
    %66 = arith.cmpi eq, %2, %65 : vector<8x192xi32>
    %67 = arith.ori %62, %66 : vector<8x192xi1>
    %c96_i32_9 = arith.constant 96 : i32
    %68 = vector.broadcast %c96_i32_9 : i32 to vector<8x1xi32>
    %69 = arith.addi %57, %68 : vector<8x1xi32>
    %70 = vector.broadcast %69 : vector<8x1xi32> to vector<8x192xi32>
    %71 = arith.cmpi eq, %2, %70 : vector<8x192xi32>
    %72 = arith.ori %67, %71 : vector<8x192xi1>
    %73 = arith.ori %55, %72 : vector<8x192xi1>
    %cst = arith.constant 1.000000e+00 : f32
    %cst_10 = arith.constant 0.000000e+00 : f32
    %74 = vector.broadcast %cst : f32 to vector<8x192xf32>
    %75 = vector.broadcast %cst_10 : f32 to vector<8x192xf32>
    %76 = arith.select %73, %74, %75 : vector<8x192xi1>, vector<8x192xf32>
    %77 = arith.truncf %76 : vector<8x192xf32> to vector<8x192xbf16>
    %c0_11 = arith.constant 0 : index
    %c0_12 = arith.constant 0 : index
    %78 = vector.load %arg3[%c0_11, %c0_12] : memref<192x128xbf16, #tpu.memory_space<vmem>>, vector<192x128xbf16>
    %cst_13 = arith.constant dense<0.000000e+00> : vector<8x128xf32>
    %79 = tpu.matmul %77, %78, %cst_13 {dimension_numbers = #tpu.dot_dimension_numbers<[1], [0], [0], [1], [0, 0, 1, 1], [], []>} : vector<8x192xbf16>, vector<192x128xbf16>, vector<8x128xf32> -> vector<8x128xf32>
    %c0_14 = arith.constant 0 : index
    %c0_15 = arith.constant 0 : index
    %80 = vector.load %arg4[%c0_14, %c0_15] : memref<8x128xf32, #tpu.memory_space<vmem>>, vector<8x128xf32>
    tpu.vector_store %arg4[%c0_14, %c0_15], %79 {strides = array<i32>} : memref<8x128xf32, #tpu.memory_space<vmem>>, vector<8x128xf32>,
    return
  }
  func.func @transform_0(%arg0: i32) -> (i32, i32) {
    %c0_i32 = arith.constant 0 : i32
    %c0_i32_0 = arith.constant 0 : i32
    return %arg0, %c0_i32 : i32, i32
  }
  func.func @transform_1(%arg0: i32) -> (i32, i32) {
    %c0_i32 = arith.constant 0 : i32
    %c0_i32_0 = arith.constant 0 : i32
    return %arg0, %c0_i32 : i32, i32
  }
  func.func @transform_2(%arg0: i32) -> (i32, i32) {
    %c0_i32 = arith.constant 0 : i32
    %c0_i32_0 = arith.constant 0 : i32
    %c0_i32_1 = arith.constant 0 : i32
    return %c0_i32, %c0_i32_0 : i32, i32
  }
  func.func @transform_3(%arg0: i32) -> (i32, i32) {
    %c0_i32 = arith.constant 0 : i32
    %c0_i32_0 = arith.constant 0 : i32
    return %arg0, %c0_i32 : i32, i32
  }
}

</mosaic_0001>

<llo_original>
// kernel: tpu_custom_call.1
$region0: #{tpu_custom_call.1}
  #allocation0 [shape = 'u32[]', space=smem, size = 0x4, offset = 0x4, fixed_abs, tag = 'smem constant byte address 0x4 - core index']
  #allocation1 [shape = 'u32[144,128]{1,0:T(1,128)}', space=vmem, size = 0x12000, scoped, tag = 'internal scratch']
  %s0 = inlined_call_operand.vmem [shape: s32[8,4], index: 0, kind: input, shape index: {}]
  %s1 = inlined_call_operand.vmem [shape: s32[8,4], index: 1, kind: input, shape index: {}]
  %s2 = inlined_call_operand.hbm [shape: bf16[192,128], index: 2, kind: input, shape index: {}]
  %s3 = inlined_call_operand.hbm [shape: f32[8,128], index: 3, kind: output, shape index: {}]
  %s4 = sld [smem:[#allocation0]]
  $region26: #{tpu_custom_call.1} parent=0
    _
  %s6 = ssub.s32 1, %s4
  %s7 = scalar_select 0, %s6, %s4
  $region1: #{tpu_custom_call.1} parent=0
    #allocation2 [shape = 'u8[49152]{0}', space=vmem, size = 0xc000, scoped, tag = 'input window, operand 2, single buffered']
    #allocation3 [shape = 's32[1]{0}', space=sflag, size = 0x4, scoped, tag = 'scoped memory for tpu_custom_call.1']
    #allocation4 [shape = 's32[1]{0}', space=sflag, size = 0x4, scoped, tag = 'scoped memory for tpu_custom_call.1']
    #allocation5 [shape = 'u8[4096]{0}', space=vmem, size = 0x1000, scoped, tag = 'output window, operand 0, single buffered']
    %8 = vsyncpa [#allocation3], 0
    %9 = vsyncpa [#allocation4], 0
    // Predicated region
    $region2: #{tpu_custom_call.1} parent=1 // pred_check
      _
    $region3: #{tpu_custom_call.1} parent=1 // pred_check_branch
      %11 = sbr.rel (0) target = $region5
    $region4: #{tpu_custom_call.1} parent=1 // pred_region
      _
    $region5: #{tpu_custom_call.1} parent=1 // pred_fallthru
      _
    // Predicated region
    $region6: #{tpu_custom_call.1} parent=1 // pred_check
      _
    $region7: #{tpu_custom_call.1} parent=1 // pred_check_branch
      %13 = sbr.rel (0) target = $region9
    $region8: #{tpu_custom_call.1} parent=1 // pred_region
      _
    $region9: #{tpu_custom_call.1} parent=1 // pred_fallthru
      _
    // Predicated region
    $region10: #{tpu_custom_call.1} parent=1 // pred_check
      _
    $region11: #{tpu_custom_call.1} parent=1 // pred_check_branch
      %15 = sbr.rel (0) target = $region13
    $region12: #{tpu_custom_call.1} parent=1 // pred_region
      %s17 = ssub.s32 1536, 1536
      %18 = vsyncadd [#allocation3], %s17
      %s19 = sshll.u32 [#allocation2], 4
      %s20 = int_to_ptr.vmem [resolvable:$true] %s19
      %25 = dma.hbm_to_vmem [thread:$0]  %s2, 1536, %s20, [#allocation3], 64, 64, 4
    $region13: #{tpu_custom_call.1} parent=1 // pred_fallthru
      _
    // Predicated region
    $region14: #{tpu_custom_call.1} parent=1 // pred_check
      _
    $region15: #{tpu_custom_call.1} parent=1 // pred_check_branch
      %27 = sbr.rel (0) target = $region17
    $region16: #{tpu_custom_call.1} parent=1 // pred_region
      %28 = dma.done [#allocation3], 1536
    $region17: #{tpu_custom_call.1} parent=1 // pred_fallthru
      _
    %v30 = vld [vmem:[%s0] sm:$0xff]
    %v31 = vld [vmem:[%s1] sm:$0xff]
    %v32 = vlaneseq
    %v33 = vand.u32 %v32, 127
    %v34 = vadd.s32 %v33, 128
    %35 = vset.pattern.permute.xlu0 0
    %36 = vperm.xlu0 %35, %v30
    %v37 = vpop.permute.xlu0 %36
    %vm38 = vcmp.eq.s32.totalorder %v33, %v37
    %vm39 = vcmp.eq.s32.totalorder %v34, %v37
    %40 = vset.pattern.permute.xlu0 0
    %41 = vperm.xlu0 %40, %v31
    %v42 = vpop.permute.xlu0 %41
    %vm43 = vcmp.eq.s32.totalorder %v33, %v42
    %vm44 = vcmp.eq.s32.totalorder %v34, %v42
    %vm45 = vmor %vm38, %vm43
    %vm46 = vmor %vm39, %vm44
    %v47 = vadd.s32 %v30, 96
    %48 = vset.pattern.permute.xlu0 0
    %49 = vperm.xlu0 %48, %v47
    %v50 = vpop.permute.xlu0 %49
    %vm51 = vcmp.eq.s32.totalorder %v33, %v50
    %vm52 = vcmp.eq.s32.totalorder %v34, %v50
    %vm53 = vmor %vm45, %vm51
    %vm54 = vmor %vm46, %vm52
    %v55 = vadd.s32 %v31, 96
    %56 = vset.pattern.permute.xlu0 0
    %57 = vperm.xlu0 %56, %v55
    %v58 = vpop.permute.xlu0 %57
    %vm59 = vcmp.eq.s32.totalorder %v33, %v58
    %vm60 = vcmp.eq.s32.totalorder %v34, %v58
    %vm61 = vmor %vm53, %vm59
    %vm62 = vmor %vm54, %vm60
    %63 = vset.pattern.permute.xlu0 1
    %64 = vperm.xlu0 %63, %v30
    %v65 = vpop.permute.xlu0 %64
    %vm66 = vcmp.eq.s32.totalorder %v33, %v65
    %vm67 = vcmp.eq.s32.totalorder %v34, %v65
    %68 = vset.pattern.permute.xlu0 1
    %69 = vperm.xlu0 %68, %v31
    %v70 = vpop.permute.xlu0 %69
    %vm71 = vcmp.eq.s32.totalorder %v33, %v70
    %vm72 = vcmp.eq.s32.totalorder %v34, %v70
    %vm73 = vmor %vm66, %vm71
    %vm74 = vmor %vm67, %vm72
    %75 = vset.pattern.permute.xlu0 1
    %76 = vperm.xlu0 %75, %v47
    %v77 = vpop.permute.xlu0 %76
    %vm78 = vcmp.eq.s32.totalorder %v33, %v77
    %vm79 = vcmp.eq.s32.totalorder %v34, %v77
    %vm80 = vmor %vm73, %vm78
    %vm81 = vmor %vm74, %vm79
    %82 = vset.pattern.permute.xlu0 1
    %83 = vperm.xlu0 %82, %v55
    %v84 = vpop.permute.xlu0 %83
    %vm85 = vcmp.eq.s32.totalorder %v33, %v84
    %vm86 = vcmp.eq.s32.totalorder %v34, %v84
    %vm87 = vmor %vm80, %vm85
    %vm88 = vmor %vm81, %vm86
    %vm89 = vmor %vm61, %vm87
    %vm90 = vmor %vm62, %vm88
    %91 = vset.pattern.permute.xlu0 2
    %92 = vperm.xlu0 %91, %v30
    %v93 = vpop.permute.xlu0 %92
    %vm94 = vcmp.eq.s32.totalorder %v33, %v93
    %vm95 = vcmp.eq.s32.totalorder %v34, %v93
    %96 = vset.pattern.permute.xlu0 2
    %97 = vperm.xlu0 %96, %v31
    %v98 = vpop.permute.xlu0 %97
    %vm99 = vcmp.eq.s32.totalorder %v33, %v98
    %vm100 = vcmp.eq.s32.totalorder %v34, %v98
    %vm101 = vmor %vm94, %vm99
    %vm102 = vmor %vm95, %vm100
    %103 = vset.pattern.permute.xlu0 2
    %104 = vperm.xlu0 %103, %v47
    %v105 = vpop.permute.xlu0 %104
    %vm106 = vcmp.eq.s32.totalorder %v33, %v105
    %vm107 = vcmp.eq.s32.totalorder %v34, %v105
    %vm108 = vmor %vm101, %vm106
    %vm109 = vmor %vm102, %vm107
    %110 = vset.pattern.permute.xlu0 2
    %111 = vperm.xlu0 %110, %v55
    %v112 = vpop.permute.xlu0 %111
    %vm113 = vcmp.eq.s32.totalorder %v33, %v112
    %vm114 = vcmp.eq.s32.totalorder %v34, %v112
    %vm115 = vmor %vm108, %vm113
    %vm116 = vmor %vm109, %vm114
    %vm117 = vmor %vm89, %vm115
    %vm118 = vmor %vm90, %vm116
    %119 = vset.pattern.permute.xlu0 3
    %120 = vperm.xlu0 %119, %v30
    %v121 = vpop.permute.xlu0 %120
    %vm122 = vcmp.eq.s32.totalorder %v33, %v121
    %vm123 = vcmp.eq.s32.totalorder %v34, %v121
    %124 = vset.pattern.permute.xlu0 3
    %125 = vperm.xlu0 %124, %v31
    %v126 = vpop.permute.xlu0 %125
    %vm127 = vcmp.eq.s32.totalorder %v33, %v126
    %vm128 = vcmp.eq.s32.totalorder %v34, %v126
    %vm129 = vmor %vm122, %vm127
    %vm130 = vmor %vm123, %vm128
    %131 = vset.pattern.permute.xlu0 3
    %132 = vperm.xlu0 %131, %v47
    %v133 = vpop.permute.xlu0 %132
    %vm134 = vcmp.eq.s32.totalorder %v33, %v133
    %vm135 = vcmp.eq.s32.totalorder %v34, %v133
    %vm136 = vmor %vm129, %vm134
    %vm137 = vmor %vm130, %vm135
    %138 = vset.pattern.permute.xlu0 3
    %139 = vperm.xlu0 %138, %v55
    %v140 = vpop.permute.xlu0 %139
    %vm141 = vcmp.eq.s32.totalorder %v33, %v140
    %vm142 = vcmp.eq.s32.totalorder %v34, %v140
    %vm143 = vmor %vm136, %vm141
    %vm144 = vmor %vm137, %vm142
    %vm145 = vmor %vm117, %vm143
    %vm146 = vmor %vm118, %vm144
    %v147 = vsel %vm145, 1.0, 0.0
    %v148 = vsel %vm146, 1.0, 0.0
    %v149 = vpack.c.bf16 %v147, %v147
    %v150 = vpack.c.bf16 %v148, %v148
    %v151 = vld [vmem:[#allocation2] sm:$0xf]
    %v152 = vld [vmem:[#allocation2 + $0x4] sm:$0xf]
    %v153 = vld [vmem:[#allocation2 + $0x8] sm:$0xf]
    %v154 = vld [vmem:[#allocation2 + $0xc] sm:$0xf]
    %v155 = vld [vmem:[#allocation2 + $0x10] sm:$0xf]
    %v156 = vld [vmem:[#allocation2 + $0x14] sm:$0xf]
    %v157 = vld [vmem:[#allocation2 + $0x18] sm:$0xf]
    %v158 = vld [vmem:[#allocation2 + $0x1c] sm:$0xf]
    %v159 = vld [vmem:[#allocation2 + $0x20] sm:$0xf]
    %v160 = vld [vmem:[#allocation2 + $0x24] sm:$0xf]
    %v161 = vld [vmem:[#allocation2 + $0x28] sm:$0xf]
    %v162 = vld [vmem:[#allocation2 + $0x2c] sm:$0xf]
    %v163 = vld [vmem:[#allocation2 + $0x30] sm:$0xf]
    %v164 = vld [vmem:[#allocation2 + $0x34] sm:$0xf]
    %v165 = vld [vmem:[#allocation2 + $0x38] sm:$0xf]
    %v166 = vld [vmem:[#allocation2 + $0x3c] sm:$0xf]
    %v167 = vld [vmem:[#allocation2 + $0x40] sm:$0xf]
    %v168 = vld [vmem:[#allocation2 + $0x44] sm:$0xf]
    %v169 = vld [vmem:[#allocation2 + $0x48] sm:$0xf]
    %v170 = vld [vmem:[#allocation2 + $0x4c] sm:$0xf]
    %v171 = vld [vmem:[#allocation2 + $0x50] sm:$0xf]
    %v172 = vld [vmem:[#allocation2 + $0x54] sm:$0xf]
    %v173 = vld [vmem:[#allocation2 + $0x58] sm:$0xf]
    %v174 = vld [vmem:[#allocation2 + $0x5c] sm:$0xf]
    %v199 = vunpack.c.l.b16 %v151
    %v200 = vunpack.c.l.b16 %v152
    %v201 = vunpack.c.l.b16 %v153
    %v202 = vunpack.c.l.b16 %v154
    %v203 = vunpack.c.l.b16 %v155
    %v204 = vunpack.c.l.b16 %v156
    %v205 = vunpack.c.l.b16 %v157
    %v206 = vunpack.c.l.b16 %v158
    %v207 = vunpack.c.l.b16 %v159
    %v208 = vunpack.c.l.b16 %v160
    %v209 = vunpack.c.l.b16 %v161
    %v210 = vunpack.c.l.b16 %v162
    %v211 = vunpack.c.l.b16 %v163
    %v212 = vunpack.c.l.b16 %v164
    %v213 = vunpack.c.l.b16 %v165
    %v214 = vunpack.c.l.b16 %v166
    %v215 = vunpack.c.l.b16 %v167
    %v216 = vunpack.c.l.b16 %v168
    %v217 = vunpack.c.l.b16 %v169
    %v218 = vunpack.c.l.b16 %v170
    %v219 = vunpack.c.l.b16 %v171
    %v220 = vunpack.c.l.b16 %v172
    %v221 = vunpack.c.l.b16 %v173
    %v222 = vunpack.c.l.b16 %v174
    %v223 = vpack.c.b16 %v200, %v199
    %v224 = vpack.c.b16 %v202, %v201
    %v225 = vpack.c.b16 %v204, %v203
    %v226 = vpack.c.b16 %v206, %v205
    %v227 = vpack.c.b16 %v208, %v207
    %v228 = vpack.c.b16 %v210, %v209
    %v229 = vpack.c.b16 %v212, %v211
    %v230 = vpack.c.b16 %v214, %v213
    %v231 = vpack.c.b16 %v216, %v215
    %v232 = vpack.c.b16 %v218, %v217
    %v233 = vpack.c.b16 %v220, %v219
    %v234 = vpack.c.b16 %v222, %v221
    %vm247 = vcmask 523264
    %v249 = vsel %vm247, %v150, 0
    %251 = vmatprep.subr.bf16.mxu0 0
    %252 = vmatpush1.bf16.msra.mxu0 %v223
    %253 = vmatprep.subr.bf16.mxu0 0
    %254 = vmatpush1.bf16.msra.mxu0 %v224
    %255 = vmatprep.subr.bf16.mxu0 0
    %256 = vmatpush1.bf16.msra.mxu0 %v225
    %257 = vmatprep.subr.bf16.mxu0 0
    %258 = vmatpush1.bf16.msra.mxu0 %v226
    %259 = vmatprep.subr.bf16.mxu0 0
    %260 = vmatpush1.bf16.msra.mxu0 %v227
    %261 = vmatprep.subr.bf16.mxu0 0
    %262 = vmatpush1.bf16.msra.mxu0 %v228
    %263 = vmatprep.subr.bf16.mxu0 0
    %264 = vmatpush1.bf16.msra.mxu0 %v229
    %265 = vmatprep.subr.bf16.mxu0 0
    %266 = vmatpush1.bf16.msra.mxu0 %v230
    %267 = vmatprep.subr.bf16.mxu0 0
    %268 = vmatpush1.bf16.msra.mxu0 %v231
    %269 = vmatprep.subr.bf16.mxu0 0
    %270 = vmatpush1.bf16.msra.mxu0 %v232
    %271 = vmatprep.subr.bf16.mxu0 0
    %272 = vmatpush1.bf16.msra.mxu0 %v233
    %273 = vmatprep.subr.bf16.mxu0 0
    %274 = vmatpush1.bf16.msra.mxu0 %v234
    %275 = vmatprep.subr.bf16.mxu0 0
    %276 = vmatpush1.bf16.msra.mxu0 0
    %277 = vmatprep.subr.bf16.mxu0 0
    %278 = vmatpush1.bf16.msra.mxu0 0
    %279 = vmatprep.subr.bf16.mxu0 0
    %280 = vmatpush1.bf16.msra.mxu0 0
    %281 = vmatprep.subr.bf16.mxu0 0
    %282 = vmatpush1.bf16.msra.mxu0 0
    %283 = vmatprep.mubr.bf16.mxu0 %v249
    %284 = vmatmul.mubr.bf16.gmra.mrb[0].mxu0 %v149
    %v285 = vpop.f32.mrb[0].mxu0
    %v286 = vadd.f32 0.0, %v285
    %v287 = vpop.f32.mrb[0].mxu0
    %v288 = vpop.f32.mrb[0].mxu0
    %v289 = vpop.f32.mrb[0].mxu0
    %290 = vdwg.mxu0
    %291 = vst [vmem:[#allocation5] sm:$0xff] %v286
    // Predicated region
    $region18: #{tpu_custom_call.1} parent=1 // pred_check
      _
    $region19: #{tpu_custom_call.1} parent=1 // pred_check_branch
      %293 = sbr.rel (0) target = $region21
    $region20: #{tpu_custom_call.1} parent=1 // pred_region
      %s295 = ssub.s32 128, 128
      %296 = vsyncadd [#allocation4], %s295
      %s298 = sshll.u32 [#allocation5], 4
      %s299 = int_to_ptr.vmem [resolvable:$true] %s298
      %301 = dma.vmem_to_hbm [thread:$0]  %s299, 128, %s3, [#allocation4]
    $region21: #{tpu_custom_call.1} parent=1 // pred_fallthru
      _
    // Predicated region
    $region22: #{tpu_custom_call.1} parent=1 // pred_check
      _
    $region23: #{tpu_custom_call.1} parent=1 // pred_check_branch
      %303 = sbr.rel (0) target = $region25
    $region24: #{tpu_custom_call.1} parent=1 // pred_region
      %304 = dma.done [#allocation4], 128
    $region25: #{tpu_custom_call.1} parent=1 // pred_fallthru
      _
    %305 = vsyncpa [#allocation3], 1
    %306 = vsyncpa [#allocation4], 1

</llo_original>
